<compile_context>
chip_gen: v5e
topology: v5e:2x2
jax: 0.10.0
libtpu: 0.0.40
codegen_flags: <defaults>
</compile_context>

<pallas_src>
import jax
import jax.numpy as jnp
from jax.experimental import pallas as pl
from jax.experimental.pallas import tpu as pltpu

MAX_TB = 512  # batch-tile upper bound (past the per-grid-step-overhead knee)


def _round_up(n, m):
    return ((n + m - 1) // m) * m


def _choose_batch_tile(B, max_tb=MAX_TB):
    """Batch tile: multiple of 8 sublanes, clamped for small batches, and
    (when the batch allows) >= 2 grid steps so v7x's two TensorCores both get
    work; capped at max_tb for large batches."""
    B8 = _round_up(max(B, 1), 8)
    if B8 <= 8:
        return 8
    if B8 <= max_tb:
        return _round_up((B8 + 1) // 2, 8)  # two balanced tiles
    return max_tb


def dqn_kernel(x_ref, w1_ref, b1_ref, w2_ref, b2_ref, w3_ref, b3_ref, out_ref):
    # x tile: (tb, S) bf16 streamed from HBM. Weights/biases are VMEM-resident
    # (constant index_maps) across all grid steps; h1/h2 never touch HBM.
    x = x_ref[...]

    # fc1 + ReLU: bf16 MXU operands, f32 accumulation, f32 elementwise.
    h1 = jnp.dot(x, w1_ref[...], preferred_element_type=jnp.float32) + b1_ref[...]
    h1 = jnp.maximum(h1, 0.0)

    # fc2 + ReLU
    h2 = jnp.dot(h1.astype(jnp.bfloat16), w2_ref[...],
                 preferred_element_type=jnp.float32) + b2_ref[...]
    h2 = jnp.maximum(h2, 0.0)

    # fc3 (no activation); unpadded (tb, A) store — masked vst is cheaper than
    # 32x inflated HBM writeback in this memory-bound regime.
    out = jnp.dot(h2.astype(jnp.bfloat16), w3_ref[...],
                  preferred_element_type=jnp.float32) + b3_ref[...]
    out_ref[...] = out.astype(out_ref.dtype)


def prepare_params(params):
    """One-time conversion of (w1,b1,w2,b2,w3,b3) into kernel-ready tensors.

    Weights are (in_features, out_features) (x @ W + b == PyTorch x @ W.T + b),
    cast to bf16 here once instead of per forward call. Biases become (1, N)
    f32 rows. No lane padding anywhere.
    """
    w1, b1, w2, b2, w3, b3 = params
    bf = jnp.bfloat16
    return (
        w1.astype(bf), b1.reshape(1, -1).astype(jnp.float32),
        w2.astype(bf), b2.reshape(1, -1).astype(jnp.float32),
        w3.astype(bf), b3.reshape(1, -1).astype(jnp.float32),
    )


def dqn_forward(x, prepared):
    """x: (B, state_size) f32. prepared: output of prepare_params().
    Returns (B, action_size) f32."""
    w1, b1, w2, b2, w3, b3 = prepared
    B, S = x.shape
    A = w3.shape[1]

    tb = _choose_batch_tile(B)
    B_p = _round_up(max(B, 1), tb)

    # Stream x as bf16 (halves the dominant HBM read); pad only batch rows,
    # and only when needed. Zero rows are sliced off after the call.
    x_p = x.astype(jnp.bfloat16)
    if B_p != B:
        x_p = jnp.pad(x_p, ((0, B_p - B), (0, 0)))

    # Full-array blocks with constant index_map => weights/biases stay
    # resident in VMEM for the whole grid.
    def resident(a):
        return pl.BlockSpec(a.shape, lambda i: (0,) * a.ndim)

    out_p = pl.pallas_call(
        dqn_kernel,
        out_shape=jax.ShapeDtypeStruct((B_p, A), jnp.float32),
        grid_spec=pltpu.PrefetchScalarGridSpec(
            num_scalar_prefetch=0,
            grid=(B_p // tb,),
            in_specs=[
                pl.BlockSpec((tb, S), lambda i: (i, 0)),   # activations, tiled
                resident(w1), resident(b1),
                resident(w2), resident(b2),
                resident(w3), resident(b3),
            ],
            out_specs=pl.BlockSpec((tb, A), lambda i: (i, 0)),
        ),
        compiler_params=pltpu.CompilerParams(
            dimension_semantics=("parallel",),  # batch tiles are independent
        ),
    )(x_p, w1, b1, w2, b2, w3, b3)

    return out_p[:B] if B_p != B else out_p


def init_params(key, state_size, action_size, hidden=64):
    # Deterministic init mimicking nn.Linear's U(-1/sqrt(fan_in), 1/sqrt(fan_in)).
    def linear(key, fan_in, fan_out):
        kw, kb = jax.random.split(key)
        bound = 1.0 / jnp.sqrt(jnp.float32(fan_in))
        w = jax.random.uniform(kw, (fan_in, fan_out), jnp.float32, -bound, bound)
        b = jax.random.uniform(kb, (fan_out,), jnp.float32, -bound, bound)
        return w, b

    k1, k2, k3 = jax.random.split(key, 3)
    w1, b1 = linear(k1, state_size, hidden)
    w2, b2 = linear(k2, hidden, hidden)
    w3, b3 = linear(k3, hidden, action_size)
    return (w1, b1, w2, b2, w3, b3)


def reference(x, params):
    # Same mixed-precision math (bf16 matmul operands, f32 accum) in pure JAX.
    w1, b1, w2, b2, w3, b3 = params
    bf = jnp.bfloat16
    h1 = jnp.maximum(jnp.dot(x.astype(bf), w1.astype(bf),
                             preferred_element_type=jnp.float32) + b1, 0.0)
    h2 = jnp.maximum(jnp.dot(h1.astype(bf), w2.astype(bf),
                             preferred_element_type=jnp.float32) + b2, 0.0)
    return jnp.dot(h2.astype(bf), w3.astype(bf),
                   preferred_element_type=jnp.float32) + b3


if __name__ == "__main__":
    batch, state_size, action_size = 2, 8, 4

    key = jax.random.PRNGKey(0)
    kx, kp = jax.random.split(key)
    x = jax.random.normal(kx, (batch, state_size), dtype=jnp.float32)
    params = init_params(kp, state_size, action_size)
    prepared = prepare_params(params)  # pad/cast ONCE, reused across calls

    # Tiny-batch path (single 8-row tile).
    out = jax.block_until_ready(dqn_forward(x, prepared))
    ref = reference(x, params)
    assert out.shape == (batch, action_size)
    assert jnp.allclose(out, ref, atol=1e-3, rtol=1e-3), "mismatch vs reference"

    # Larger batch exercises the multi-step grid (two balanced tiles + slice).
    xb = jax.random.normal(kx, (300, state_size), dtype=jnp.float32)
    outb = jax.block_until_ready(dqn_forward(xb, prepared))
    refb = reference(xb, params)
    assert outb.shape == (300, action_size)
    assert jnp.allclose(outb, refb, atol=1e-3, rtol=1e-3), "mismatch vs reference"

    print("KERNEL_OK")
</pallas_src>

<mosaic_0001>
module attributes {stable_mosaic.version = 11 : i64} {
  func.func @dqn_kernel(%arg0: i32, %arg1: memref<8x8xbf16, #tpu.memory_space<vmem>>, %arg2: memref<8x64xbf16, #tpu.memory_space<vmem>>, %arg3: memref<1x64xf32, #tpu.memory_space<vmem>>, %arg4: memref<64x64xbf16, #tpu.memory_space<vmem>>, %arg5: memref<1x64xf32, #tpu.memory_space<vmem>>, %arg6: memref<64x4xbf16, #tpu.memory_space<vmem>>, %arg7: memref<1x4xf32, #tpu.memory_space<vmem>>, %arg8: memref<8x4xf32, #tpu.memory_space<vmem>>) attributes {dimension_semantics = [#tpu.dimension_semantics<parallel>], iteration_bounds = array<i64: 1>, scalar_prefetch = 0 : i64, scratch_operands = 0 : i64, tpu.core_type = #tpu.core_type<tc>, window_params = [{transform_indices = @transform_0, window_bounds = array<i64: 8, 8>}, {pipeline_mode = #tpu.pipeline_mode<synchronous>, transform_indices = @transform_1, window_bounds = array<i64: 8, 64>}, {pipeline_mode = #tpu.pipeline_mode<synchronous>, transform_indices = @transform_2, window_bounds = array<i64: 1, 64>}, {pipeline_mode = #tpu.pipeline_mode<synchronous>, transform_indices = @transform_3, window_bounds = array<i64: 64, 64>}, {pipeline_mode = #tpu.pipeline_mode<synchronous>, transform_indices = @transform_4, window_bounds = array<i64: 1, 64>}, {pipeline_mode = #tpu.pipeline_mode<synchronous>, transform_indices = @transform_5, window_bounds = array<i64: 64, 4>}, {pipeline_mode = #tpu.pipeline_mode<synchronous>, transform_indices = @transform_6, window_bounds = array<i64: 1, 4>}, {transform_indices = @transform_7, window_bounds = array<i64: 8, 4>}]} {
    %c0 = arith.constant 0 : index
    %c0_0 = arith.constant 0 : index
    %0 = vector.load %arg1[%c0, %c0_0] : memref<8x8xbf16, #tpu.memory_space<vmem>>, vector<8x8xbf16>
    %c0_1 = arith.constant 0 : index
    %c0_2 = arith.constant 0 : index
    %1 = vector.load %arg2[%c0_1, %c0_2] : memref<8x64xbf16, #tpu.memory_space<vmem>>, vector<8x64xbf16>
    %cst = arith.constant dense<0.000000e+00> : vector<8x64xf32>
    %2 = tpu.matmul %0, %1, %cst {dimension_numbers = #tpu.dot_dimension_numbers<[1], [0], [0], [1], [0, 0, 1, 1], [], []>} : vector<8x8xbf16>, vector<8x64xbf16>, vector<8x64xf32> -> vector<8x64xf32>
    %c0_3 = arith.constant 0 : index
    %c0_4 = arith.constant 0 : index
    %3 = vector.load %arg3[%c0_3, %c0_4] : memref<1x64xf32, #tpu.memory_space<vmem>>, vector<1x64xf32>
    %4 = vector.broadcast %3 : vector<1x64xf32> to vector<8x64xf32>
    %5 = arith.addf %2, %4 : vector<8x64xf32>
    %cst_5 = arith.constant 0.000000e+00 : f32
    %6 = vector.broadcast %cst_5 : f32 to vector<8x64xf32>
    %7 = arith.maximumf %5, %6 : vector<8x64xf32>
    %8 = arith.truncf %7 : vector<8x64xf32> to vector<8x64xbf16>
    %c0_6 = arith.constant 0 : index
    %c0_7 = arith.constant 0 : index
    %9 = vector.load %arg4[%c0_6, %c0_7] : memref<64x64xbf16, #tpu.memory_space<vmem>>, vector<64x64xbf16>
    %cst_8 = arith.constant dense<0.000000e+00> : vector<8x64xf32>
    %10 = tpu.matmul %8, %9, %cst_8 {dimension_numbers = #tpu.dot_dimension_numbers<[1], [0], [0], [1], [0, 0, 1, 1], [], []>} : vector<8x64xbf16>, vector<64x64xbf16>, vector<8x64xf32> -> vector<8x64xf32>
    %c0_9 = arith.constant 0 : index
    %c0_10 = arith.constant 0 : index
    %11 = vector.load %arg5[%c0_9, %c0_10] : memref<1x64xf32, #tpu.memory_space<vmem>>, vector<1x64xf32>
    %12 = vector.broadcast %11 : vector<1x64xf32> to vector<8x64xf32>
    %13 = arith.addf %10, %12 : vector<8x64xf32>
    %cst_11 = arith.constant 0.000000e+00 : f32
    %14 = vector.broadcast %cst_11 : f32 to vector<8x64xf32>
    %15 = arith.maximumf %13, %14 : vector<8x64xf32>
    %16 = arith.truncf %15 : vector<8x64xf32> to vector<8x64xbf16>
    %c0_12 = arith.constant 0 : index
    %c0_13 = arith.constant 0 : index
    %17 = vector.load %arg6[%c0_12, %c0_13] : memref<64x4xbf16, #tpu.memory_space<vmem>>, vector<64x4xbf16>
    %cst_14 = arith.constant dense<0.000000e+00> : vector<8x4xf32>
    %18 = tpu.matmul %16, %17, %cst_14 {dimension_numbers = #tpu.dot_dimension_numbers<[1], [0], [0], [1], [0, 0, 1, 1], [], []>} : vector<8x64xbf16>, vector<64x4xbf16>, vector<8x4xf32> -> vector<8x4xf32>
    %c0_15 = arith.constant 0 : index
    %c0_16 = arith.constant 0 : index
    %19 = vector.load %arg7[%c0_15, %c0_16] : memref<1x4xf32, #tpu.memory_space<vmem>>, vector<1x4xf32>
    %20 = vector.broadcast %19 : vector<1x4xf32> to vector<8x4xf32>
    %21 = arith.addf %18, %20 : vector<8x4xf32>
    %c0_17 = arith.constant 0 : index
    %c0_18 = arith.constant 0 : index
    %22 = vector.load %arg8[%c0_17, %c0_18] : memref<8x4xf32, #tpu.memory_space<vmem>>, vector<8x4xf32>
    tpu.vector_store %arg8[%c0_17, %c0_18], %21 {strides = array<i32>} : memref<8x4xf32, #tpu.memory_space<vmem>>, vector<8x4xf32>,
    return
  }
  func.func @transform_0(%arg0: i32) -> (i32, i32) {
    %c0_i32 = arith.constant 0 : i32
    %c0_i32_0 = arith.constant 0 : i32
    return %arg0, %c0_i32 : i32, i32
  }
  func.func @transform_1(%arg0: i32) -> (i32, i32) {
    %c0_i32 = arith.constant 0 : i32
    %c0_i32_0 = arith.constant 0 : i32
    %c0_i32_1 = arith.constant 0 : i32
    return %c0_i32, %c0_i32_0 : i32, i32
  }
  func.func @transform_2(%arg0: i32) -> (i32, i32) {
    %c0_i32 = arith.constant 0 : i32
    %c0_i32_0 = arith.constant 0 : i32
    %c0_i32_1 = arith.constant 0 : i32
    return %c0_i32, %c0_i32_0 : i32, i32
  }
  func.func @transform_3(%arg0: i32) -> (i32, i32) {
    %c0_i32 = arith.constant 0 : i32
    %c0_i32_0 = arith.constant 0 : i32
    %c0_i32_1 = arith.constant 0 : i32
    return %c0_i32, %c0_i32_0 : i32, i32
  }
  func.func @transform_4(%arg0: i32) -> (i32, i32) {
    %c0_i32 = arith.constant 0 : i32
    %c0_i32_0 = arith.constant 0 : i32
    %c0_i32_1 = arith.constant 0 : i32
    return %c0_i32, %c0_i32_0 : i32, i32
  }
  func.func @transform_5(%arg0: i32) -> (i32, i32) {
    %c0_i32 = arith.constant 0 : i32
    %c0_i32_0 = arith.constant 0 : i32
    %c0_i32_1 = arith.constant 0 : i32
    return %c0_i32, %c0_i32_0 : i32, i32
  }
  func.func @transform_6(%arg0: i32) -> (i32, i32) {
    %c0_i32 = arith.constant 0 : i32
    %c0_i32_0 = arith.constant 0 : i32
    %c0_i32_1 = arith.constant 0 : i32
    return %c0_i32, %c0_i32_0 : i32, i32
  }
  func.func @transform_7(%arg0: i32) -> (i32, i32) {
    %c0_i32 = arith.constant 0 : i32
    %c0_i32_0 = arith.constant 0 : i32
    return %arg0, %c0_i32 : i32, i32
  }
}

</mosaic_0001>

<llo_original>
// kernel: tpu_custom_call.1
$region0: #{tpu_custom_call.1}
  #allocation0 [shape = 'u32[]', space=smem, size = 0x4, offset = 0x4, fixed_abs, tag = 'smem constant byte address 0x4 - core index']
  #allocation1 [shape = 'u32[72,128]{1,0:T(1,128)}', space=vmem, size = 0x9000, scoped, tag = 'internal scratch']
  %s0 = inlined_call_operand.hbm [shape: bf16[8,8], index: 0, kind: input, shape index: {}]
  %s1 = inlined_call_operand.hbm [shape: bf16[8,64], index: 1, kind: input, shape index: {}]
  %s2 = inlined_call_operand.vmem [shape: f32[1,64], index: 2, kind: input, shape index: {}]
  %s3 = inlined_call_operand.vmem [shape: bf16[64,64], index: 3, kind: input, shape index: {}]
  %s4 = inlined_call_operand.vmem [shape: f32[1,64], index: 4, kind: input, shape index: {}]
  %s5 = inlined_call_operand.vmem [shape: bf16[64,4], index: 5, kind: input, shape index: {}]
  %s6 = inlined_call_operand.vmem [shape: f32[1,4], index: 6, kind: input, shape index: {}]
  %s7 = inlined_call_operand.vmem [shape: f32[8,4], index: 7, kind: output, shape index: {}]
  %s8 = sld [smem:[#allocation0]]
  $region46: #{tpu_custom_call.1} parent=0
    _
  %s10 = ssub.s32 1, %s8
  %s11 = scalar_select 0, %s10, %s8
  $region1: #{tpu_custom_call.1} parent=0
    #allocation2 [shape = 'u8[2048]{0}', space=vmem, size = 0x800, scoped, tag = 'input window, operand 0, single buffered']
    #allocation3 [shape = 's32[1]{0}', space=sflag, size = 0x4, scoped, tag = 'scoped memory for tpu_custom_call.1']
    #allocation4 [shape = 'u8[2048]{0}', space=vmem, size = 0x800, scoped, tag = 'input window, operand 1, single buffered']
    #allocation5 [shape = 's32[1]{0}', space=sflag, size = 0x4, scoped, tag = 'scoped memory for tpu_custom_call.1']
    %12 = vsyncpa [#allocation3], 0
    %13 = vsyncpa [#allocation5], 0
    // Predicated region
    $region2: #{tpu_custom_call.1} parent=1 // pred_check
      _
    $region3: #{tpu_custom_call.1} parent=1 // pred_check_branch
      %15 = sbr.rel (0) target = $region5
    $region4: #{tpu_custom_call.1} parent=1 // pred_region
      %17 = vsyncadd [#allocation3], 0
      %s19 = sshll.u32 %s0, 4
      %s20 = int_to_ptr.hbm [resolvable:$true] %s19
      %s21 = sshll.u32 [#allocation2], 4
      %s22 = int_to_ptr.vmem [resolvable:$true] %s21
      %24 = dma.hbm_to_vmem [thread:$0]  %s20, 64, %s22, [#allocation3]
    $region5: #{tpu_custom_call.1} parent=1 // pred_fallthru
      _
    // Predicated region
    $region6: #{tpu_custom_call.1} parent=1 // pred_check
      _
    $region7: #{tpu_custom_call.1} parent=1 // pred_check_branch
      %26 = sbr.rel (0) target = $region9
    $region8: #{tpu_custom_call.1} parent=1 // pred_region
      %28 = vsyncadd [#allocation5], 0
      %s30 = sshll.u32 %s1, 4
      %s31 = int_to_ptr.hbm [resolvable:$true] %s30
      %s32 = sshll.u32 [#allocation4], 4
      %s33 = int_to_ptr.vmem [resolvable:$true] %s32
      %35 = dma.hbm_to_vmem [thread:$0]  %s31, 64, %s33, [#allocation5]
    $region9: #{tpu_custom_call.1} parent=1 // pred_fallthru
      _
    // Predicated region
    $region10: #{tpu_custom_call.1} parent=1 // pred_check
      _
    $region11: #{tpu_custom_call.1} parent=1 // pred_check_branch
      %37 = sbr.rel (0) target = $region13
    $region12: #{tpu_custom_call.1} parent=1 // pred_region
      _
    $region13: #{tpu_custom_call.1} parent=1 // pred_fallthru
      _
    // Predicated region
    $region14: #{tpu_custom_call.1} parent=1 // pred_check
      _
    $region15: #{tpu_custom_call.1} parent=1 // pred_check_branch
      %39 = sbr.rel (0) target = $region17
    $region16: #{tpu_custom_call.1} parent=1 // pred_region
      _
    $region17: #{tpu_custom_call.1} parent=1 // pred_fallthru
      _
    // Predicated region
    $region18: #{tpu_custom_call.1} parent=1 // pred_check
      _
    $region19: #{tpu_custom_call.1} parent=1 // pred_check_branch
      %41 = sbr.rel (0) target = $region21
    $region20: #{tpu_custom_call.1} parent=1 // pred_region
      _
    $region21: #{tpu_custom_call.1} parent=1 // pred_fallthru
      _
    // Predicated region
    $region22: #{tpu_custom_call.1} parent=1 // pred_check
      _
    $region23: #{tpu_custom_call.1} parent=1 // pred_check_branch
      %43 = sbr.rel (0) target = $region25
    $region24: #{tpu_custom_call.1} parent=1 // pred_region
      _
    $region25: #{tpu_custom_call.1} parent=1 // pred_fallthru
      _
    // Predicated region
    $region26: #{tpu_custom_call.1} parent=1 // pred_check
      _
    $region27: #{tpu_custom_call.1} parent=1 // pred_check_branch
      %45 = sbr.rel (0) target = $region29
    $region28: #{tpu_custom_call.1} parent=1 // pred_region
      _
    $region29: #{tpu_custom_call.1} parent=1 // pred_fallthru
      _
    // Predicated region
    $region30: #{tpu_custom_call.1} parent=1 // pred_check
      _
    $region31: #{tpu_custom_call.1} parent=1 // pred_check_branch
      %47 = sbr.rel (0) target = $region33
    $region32: #{tpu_custom_call.1} parent=1 // pred_region
      %49 = dma.done [#allocation3], 64
    $region33: #{tpu_custom_call.1} parent=1 // pred_fallthru
      _
    // Predicated region
    $region34: #{tpu_custom_call.1} parent=1 // pred_check
      _
    $region35: #{tpu_custom_call.1} parent=1 // pred_check_branch
      %51 = sbr.rel (0) target = $region37
    $region36: #{tpu_custom_call.1} parent=1 // pred_region
      %53 = dma.done [#allocation5], 64
    $region37: #{tpu_custom_call.1} parent=1 // pred_fallthru
      _
    %v55 = vld [vmem:[#allocation2] sm:$0xf]
    %v56 = vld [vmem:[#allocation4] sm:$0xf]
    %v57 = vld [vmem:[%s2] sm:$0x1]
    %v59 = vperm.slane %v57, 0
    %vm61 = vcmask 64512
    %v63 = vsel %vm61, %v55, 0
    %vm65 = vcmask 1043456
    %v67 = vsel %vm65, %v56, 0
    %69 = vmatpush.bf16.msra.mxu0 0
    %70 = vmatpush.bf16.msra.mxu0 0
    %71 = vmatpush.bf16.msra.mxu0 0
    %72 = vmatpush.bf16.msra.mxu0 0
    %73 = vmatpush.bf16.msra.mxu0 0
    %74 = vmatpush.bf16.msra.mxu0 0
    %75 = vmatpush.bf16.msra.mxu0 0
    %76 = vmatpush.bf16.msra.mxu0 %v67
    %77 = vmatmul.bf16.gmra.mxu0 %v63
    %v78 = vpop.f32.mrf.mxu0
    %v79 = vadd.f32 %v59, %v78
    %v80 = vpop.f32.mrf.mxu0
    %81 = vdwg.mxu0
    %v82 = vmax.f32 %v79, 0.0
    %v83 = vpack.c.bf16 %v82, %v82
    %v84 = vld [vmem:[%s3] sm:$0xf]
    %v85 = vld [vmem:[%s3 + $0x4] sm:$0xf]
    %v86 = vld [vmem:[%s3 + $0x8] sm:$0xf]
    %v87 = vld [vmem:[%s3 + $0xc] sm:$0xf]
    %v88 = vld [vmem:[%s3 + $0x10] sm:$0xf]
    %v89 = vld [vmem:[%s3 + $0x14] sm:$0xf]
    %v90 = vld [vmem:[%s3 + $0x18] sm:$0xf]
    %v91 = vld [vmem:[%s3 + $0x1c] sm:$0xf]
    %v92 = vld [vmem:[%s4] sm:$0x1]
    %v94 = vperm.slane %v92, 0
    %v104 = vunpack.c.l.b16 %v84
    %v105 = vunpack.c.l.b16 %v85
    %v106 = vunpack.c.l.b16 %v86
    %v107 = vunpack.c.l.b16 %v87
    %v108 = vunpack.c.l.b16 %v88
    %v109 = vunpack.c.l.b16 %v89
    %v110 = vunpack.c.l.b16 %v90
    %v111 = vunpack.c.l.b16 %v91
    %v112 = vpack.c.b16 %v105, %v104
    %v113 = vpack.c.b16 %v107, %v106
    %v114 = vpack.c.b16 %v109, %v108
    %v115 = vpack.c.b16 %v111, %v110
    %vm120 = vcmask 523264
    %v122 = vsel %vm120, %v83, 0
    %124 = vmatpush.bf16.msra.mxu0 0
    %125 = vmatpush.bf16.msra.mxu0 0
    %126 = vmatpush.bf16.msra.mxu0 0
    %127 = vmatpush.bf16.msra.mxu0 0
    %128 = vmatpush.bf16.msra.mxu0 %v115
    %129 = vmatpush.bf16.msra.mxu0 %v114
    %130 = vmatpush.bf16.msra.mxu0 %v113
    %131 = vmatpush.bf16.msra.mxu0 %v112
    %132 = vmatmul.bf16.gmra.mxu0 %v122
    %v133 = vpop.f32.mrf.mxu0
    %v134 = vadd.f32 %v94, %v133
    %v135 = vpop.f32.mrf.mxu0
    %136 = vdwg.mxu0
    %v137 = vmax.f32 %v134, 0.0
    %v138 = vpack.c.bf16 %v137, %v137
    %v139 = vld [vmem:[%s5] sm:$0xf]
    %v140 = vld [vmem:[%s5 + $0x4] sm:$0xf]
    %v141 = vld [vmem:[%s5 + $0x8] sm:$0xf]
    %v142 = vld [vmem:[%s5 + $0xc] sm:$0xf]
    %v143 = vld [vmem:[%s5 + $0x10] sm:$0xf]
    %v144 = vld [vmem:[%s5 + $0x14] sm:$0xf]
    %v145 = vld [vmem:[%s5 + $0x18] sm:$0xf]
    %v146 = vld [vmem:[%s5 + $0x1c] sm:$0xf]
    %v147 = vld [vmem:[%s6] sm:$0x1]
    %v149 = vperm.slane %v147, 0
    %v159 = vunpack.c.l.b16 %v139
    %v160 = vunpack.c.l.b16 %v140
    %v161 = vunpack.c.l.b16 %v141
    %v162 = vunpack.c.l.b16 %v142
    %v163 = vunpack.c.l.b16 %v143
    %v164 = vunpack.c.l.b16 %v144
    %v165 = vunpack.c.l.b16 %v145
    %v166 = vunpack.c.l.b16 %v146
    %v167 = vpack.c.b16 %v160, %v159
    %v168 = vpack.c.b16 %v162, %v161
    %v169 = vpack.c.b16 %v164, %v163
    %v170 = vpack.c.b16 %v166, %v165
    %v176 = vsel %vm120, %v138, 0
    %178 = vmatpush.bf16.msra.mxu0 0
    %179 = vmatpush.bf16.msra.mxu0 0
    %180 = vmatpush.bf16.msra.mxu0 0
    %181 = vmatpush.bf16.msra.mxu0 0
    %182 = vmatpush.bf16.msra.mxu0 %v170
    %183 = vmatpush.bf16.msra.mxu0 %v169
    %184 = vmatpush.bf16.msra.mxu0 %v168
    %185 = vmatpush.bf16.msra.mxu0 %v167
    %186 = vmatmul.bf16.gmra.mxu0 %v176
    %v187 = vpop.f32.mrf.mxu0
    %v188 = vadd.f32 %v149, %v187
    %v189 = vpop.f32.mrf.mxu0
    %190 = vdwg.mxu0
    %vm191 = vcmask 31744
    %192 = vst.msk [vmem:[%s7] sm:$0xff] %vm191, %v188
    // Predicated region
    $region38: #{tpu_custom_call.1} parent=1 // pred_check
      _
    $region39: #{tpu_custom_call.1} parent=1 // pred_check_branch
      %194 = sbr.rel (0) target = $region41
    $region40: #{tpu_custom_call.1} parent=1 // pred_region
      _
    $region41: #{tpu_custom_call.1} parent=1 // pred_fallthru
      _
    // Predicated region
    $region42: #{tpu_custom_call.1} parent=1 // pred_check
      _
    $region43: #{tpu_custom_call.1} parent=1 // pred_check_branch
      %196 = sbr.rel (0) target = $region45
    $region44: #{tpu_custom_call.1} parent=1 // pred_region
      _
    $region45: #{tpu_custom_call.1} parent=1 // pred_fallthru
      _
    %197 = vsyncpa [#allocation3], 1
    %198 = vsyncpa [#allocation5], 1

</llo_original>
